<compile_context>
chip_gen: v5e
topology: v5e:2x2
jax: 0.10.0
libtpu: 0.0.40
codegen_flags: <defaults>
</compile_context>

<pallas_src>
import jax
import jax.numpy as jnp
import numpy as np
from jax.experimental import pallas as pl
from jax.experimental.pallas import tpu as pltpu


IN_FEATURES = 28 * 28   # 784
HIDDEN1 = 128
HIDDEN2 = 32
OUT_FEATURES = 1

# Batch tile: 4096 * 784 * 4B (f32) ~= 12.3 MiB per buffer, ~25 MiB double
# buffered -> fits v7x (64 MiB/TC) with headroom, amortizes the ~0.35 us
# per-grid-step overhead on v5e/v6e.
DEFAULT_BLOCK_B = 4096


def _leaky_relu(x, slope=0.2):
    return jnp.where(x > 0, x, slope * x)


def discriminator_kernel(x_ref, w1_ref, b1_ref, w2_ref, b2_ref, w3t_ref,
                         b3_ref, o_ref):
    """One batch tile of the MLP.

    x_ref : (tb, 784) f32       w1_ref: (784, 128) bf16   b1_ref: (1, 128) f32
    w2_ref: (128, 32) bf16      b2_ref: (1, 32)  f32
    w3t_ref: (1, 32)  bf16      b3_ref: (1, 1)   f32
    o_ref : (1, tb)   f32   (lane-dense row output)
    """
    # x streamed as f32; cast to bf16 here (VPU has slack; HBM carries only a
    # single f32 read of x, no separate cast/pad pass in the wrapper).
    x = x_ref[...].astype(jnp.bfloat16)

    # Linear(784 -> 128) + LeakyReLU(0.2)    [bf16 matmul, f32 accumulate]
    h1 = jnp.dot(x, w1_ref[...], preferred_element_type=jnp.float32)
    h1 = _leaky_relu(h1 + b1_ref[...])
    # Dropout -> identity (eval mode)

    # Linear(128 -> 32) + LeakyReLU(0.2)
    h2 = jnp.dot(h1.astype(jnp.bfloat16), w2_ref[...],
                 preferred_element_type=jnp.float32)
    h2 = _leaky_relu(h2 + b2_ref[...])
    # Dropout -> identity (eval mode)

    # Linear(32 -> 1), emitted lane-dense as a (1, tb) row:
    #   (1, 32) . (tb, 32)^T -> (1, tb)   (trans_b matmul; no column store)
    out_row = jax.lax.dot_general(
        w3t_ref[...], h2.astype(jnp.bfloat16),
        dimension_numbers=(((1,), (1,)), ((), ())),
        preferred_element_type=jnp.float32)
    o_ref[...] = (out_row + b3_ref[...]).astype(o_ref.dtype)


def _choose_tb(batch, block_b):
    """Batch tile size: multiple of 8 (128 when multi-tile); >=2 tiles when
    the batch is big enough so both v7x TensorCores get work."""
    if batch <= 8:
        return batch                       # single block == full array dims
    b8 = ((batch + 7) // 8) * 8
    if b8 <= block_b:
        if b8 >= 2048:
            half = (batch + 1) // 2
            return ((half + 127) // 128) * 128   # 2 tiles, lane-aligned output
        return b8                          # single tile
    return block_b


def discriminator_zero(x, params, *, block_b=DEFAULT_BLOCK_B):
    """x: (B, 1, 28, 28) float32 (NCHW). Returns (B, 1) float32."""
    w1, b1, w2, b2, w3, b3 = params
    B = x.shape[0]
    x_flat = x.reshape(B, -1)              # nn.Flatten(start_dim=1); free reshape
    assert x_flat.shape[1] == IN_FEATURES

    tb = _choose_tb(B, block_b)
    n_tiles = pl.cdiv(B, tb)

    # Weights to bf16 (tiny, ~0.2 MiB); biases stay f32. w3 stored transposed
    # so the last layer can be computed directly in row orientation.
    w1b = w1.astype(jnp.bfloat16)
    w2b = w2.astype(jnp.bfloat16)
    w3t = w3.T.astype(jnp.bfloat16)        # (1, 32)

    flops = 2 * B * (IN_FEATURES * HIDDEN1
                     + HIDDEN1 * HIDDEN2
                     + HIDDEN2 * OUT_FEATURES)
    bytes_accessed = (
        B * IN_FEATURES * 4                            # x read as f32
        + n_tiles * tb * 4                             # lane-dense f32 output
        + (IN_FEATURES * HIDDEN1 + HIDDEN1 * HIDDEN2
           + HIDDEN2 * OUT_FEATURES) * 2               # weights (bf16)
        + (HIDDEN1 + HIDDEN2 + OUT_FEATURES) * 4       # biases (f32)
    )

    out = pl.pallas_call(
        discriminator_kernel,
        out_shape=jax.ShapeDtypeStruct((1, n_tiles * tb), jnp.float32),
        grid=(n_tiles,),
        in_specs=[
            # x: tiled over batch -> software-pipelined HBM->VMEM DMA.
            pl.BlockSpec((tb, IN_FEATURES), lambda i: (i, 0)),
            # Weights / biases: full shape, constant index map -> VMEM-resident.
            pl.BlockSpec((IN_FEATURES, HIDDEN1), lambda i: (0, 0)),
            pl.BlockSpec((1, HIDDEN1), lambda i: (0, 0)),
            pl.BlockSpec((HIDDEN1, HIDDEN2), lambda i: (0, 0)),
            pl.BlockSpec((1, HIDDEN2), lambda i: (0, 0)),
            pl.BlockSpec((1, HIDDEN2), lambda i: (0, 0)),          # w3^T
            pl.BlockSpec((1, OUT_FEATURES), lambda i: (0, 0)),     # b3
        ],
        out_specs=pl.BlockSpec((1, tb), lambda i: (0, i)),
        compiler_params=pltpu.CompilerParams(
            dimension_semantics=("parallel",),
            vmem_limit_bytes=48 << 20,
        ),
        cost_estimate=pl.CostEstimate(flops=flops, transcendentals=0,
                                      bytes_accessed=bytes_accessed),
    )(x_flat, w1b, b1, w2b, b2, w3t, b3)

    # Tail entries of a ragged last tile are garbage -> slice them off.
    return out.reshape(-1)[:B].reshape(B, OUT_FEATURES)


def init_params(key):
    """Deterministic init mimicking PyTorch nn.Linear default:
    U(-1/sqrt(fan_in), 1/sqrt(fan_in)) for both weight and bias."""
    def linear(key, fan_in, fan_out):
        kw, kb = jax.random.split(key)
        bound = 1.0 / np.sqrt(fan_in)
        # Stored as (fan_in, fan_out) so the kernel computes x @ W.
        w = jax.random.uniform(kw, (fan_in, fan_out), jnp.float32,
                               minval=-bound, maxval=bound)
        b = jax.random.uniform(kb, (1, fan_out), jnp.float32,
                               minval=-bound, maxval=bound)
        return w, b

    k1, k2, k3 = jax.random.split(key, 3)
    w1, b1 = linear(k1, IN_FEATURES, HIDDEN1)
    w2, b2 = linear(k2, HIDDEN1, HIDDEN2)
    w3, b3 = linear(k3, HIDDEN2, OUT_FEATURES)
    return (w1, b1, w2, b2, w3, b3)


def _reference(x, params):
    """Pure-JAX reference using the same mixed precision as the kernel."""
    w1, b1, w2, b2, w3, b3 = params
    h = x.reshape(x.shape[0], -1).astype(jnp.bfloat16)
    h1 = jnp.dot(h, w1.astype(jnp.bfloat16),
                 preferred_element_type=jnp.float32)
    h1 = _leaky_relu(h1 + b1)
    h2 = jnp.dot(h1.astype(jnp.bfloat16), w2.astype(jnp.bfloat16),
                 preferred_element_type=jnp.float32)
    h2 = _leaky_relu(h2 + b2)
    out = jnp.dot(h2.astype(jnp.bfloat16), w3.astype(jnp.bfloat16),
                  preferred_element_type=jnp.float32)
    return out + b3


if __name__ == "__main__":
    key = jax.random.PRNGKey(0)
    k_params, k_x = jax.random.split(key)

    params = init_params(k_params)
    # MNIST-like input consistent with the 28*28 Flatten: (B, C, H, W).
    x = jax.random.normal(k_x, (2, 1, 28, 28), dtype=jnp.float32)

    out = discriminator_zero(x, params)
    out = jax.block_until_ready(out)

    ref = _reference(x, params)
    # bf16 matmul inputs -> tolerance looser than pure-f32.
    np.testing.assert_allclose(np.asarray(out), np.asarray(ref),
                               rtol=1e-2, atol=1e-2)

    assert out.shape == (2, 1)
    print("KERNEL_OK")
</pallas_src>

<mosaic_0001>
module attributes {stable_mosaic.version = 11 : i64} {
  func.func @discriminator_kernel(%arg0: i32, %arg1: memref<2x784xf32, #tpu.memory_space<vmem>>, %arg2: memref<784x128xbf16, #tpu.memory_space<vmem>>, %arg3: memref<1x128xf32, #tpu.memory_space<vmem>>, %arg4: memref<128x32xbf16, #tpu.memory_space<vmem>>, %arg5: memref<1x32xf32, #tpu.memory_space<vmem>>, %arg6: memref<1x32xbf16, #tpu.memory_space<vmem>>, %arg7: memref<1x1xf32, #tpu.memory_space<vmem>>, %arg8: memref<1x2xf32, #tpu.memory_space<vmem>>) attributes {dimension_semantics = [#tpu.dimension_semantics<parallel>], iteration_bounds = array<i64: 1>, scalar_prefetch = 0 : i64, scratch_operands = 0 : i64, tpu.core_type = #tpu.core_type<tc>, window_params = [{transform_indices = @transform_0, window_bounds = array<i64: 2, 784>}, {pipeline_mode = #tpu.pipeline_mode<synchronous>, transform_indices = @transform_1, window_bounds = array<i64: 784, 128>}, {pipeline_mode = #tpu.pipeline_mode<synchronous>, transform_indices = @transform_2, window_bounds = array<i64: 1, 128>}, {pipeline_mode = #tpu.pipeline_mode<synchronous>, transform_indices = @transform_3, window_bounds = array<i64: 128, 32>}, {pipeline_mode = #tpu.pipeline_mode<synchronous>, transform_indices = @transform_4, window_bounds = array<i64: 1, 32>}, {pipeline_mode = #tpu.pipeline_mode<synchronous>, transform_indices = @transform_5, window_bounds = array<i64: 1, 32>}, {pipeline_mode = #tpu.pipeline_mode<synchronous>, transform_indices = @transform_6, window_bounds = array<i64: 1, 1>}, {transform_indices = @transform_7, window_bounds = array<i64: 1, 2>}]} {
    %c0 = arith.constant 0 : index
    %c0_0 = arith.constant 0 : index
    %0 = vector.load %arg1[%c0, %c0_0] : memref<2x784xf32, #tpu.memory_space<vmem>>, vector<2x784xf32>
    %1 = arith.truncf %0 : vector<2x784xf32> to vector<2x784xbf16>
    %c0_1 = arith.constant 0 : index
    %c0_2 = arith.constant 0 : index
    %2 = vector.load %arg2[%c0_1, %c0_2] : memref<784x128xbf16, #tpu.memory_space<vmem>>, vector<784x128xbf16>
    %cst = arith.constant dense<0.000000e+00> : vector<2x128xf32>
    %3 = tpu.matmul %1, %2, %cst {dimension_numbers = #tpu.dot_dimension_numbers<[1], [0], [0], [1], [0, 0, 1, 1], [], []>} : vector<2x784xbf16>, vector<784x128xbf16>, vector<2x128xf32> -> vector<2x128xf32>
    %c0_3 = arith.constant 0 : index
    %c0_4 = arith.constant 0 : index
    %4 = vector.load %arg3[%c0_3, %c0_4] : memref<1x128xf32, #tpu.memory_space<vmem>>, vector<1x128xf32>
    %5 = vector.broadcast %4 : vector<1x128xf32> to vector<2x128xf32>
    %6 = arith.addf %3, %5 : vector<2x128xf32>
    %cst_5 = arith.constant 0.000000e+00 : f32
    %7 = vector.broadcast %cst_5 : f32 to vector<2x128xf32>
    %8 = arith.cmpf ogt, %6, %7 : vector<2x128xf32>
    %cst_6 = arith.constant 2.000000e-01 : f32
    %9 = vector.broadcast %cst_6 : f32 to vector<2x128xf32>
    %10 = arith.mulf %9, %6 : vector<2x128xf32>
    %11 = arith.select %8, %6, %10 : vector<2x128xi1>, vector<2x128xf32>
    %12 = arith.truncf %11 : vector<2x128xf32> to vector<2x128xbf16>
    %c0_7 = arith.constant 0 : index
    %c0_8 = arith.constant 0 : index
    %13 = vector.load %arg4[%c0_7, %c0_8] : memref<128x32xbf16, #tpu.memory_space<vmem>>, vector<128x32xbf16>
    %cst_9 = arith.constant dense<0.000000e+00> : vector<2x32xf32>
    %14 = tpu.matmul %12, %13, %cst_9 {dimension_numbers = #tpu.dot_dimension_numbers<[1], [0], [0], [1], [0, 0, 1, 1], [], []>} : vector<2x128xbf16>, vector<128x32xbf16>, vector<2x32xf32> -> vector<2x32xf32>
    %c0_10 = arith.constant 0 : index
    %c0_11 = arith.constant 0 : index
    %15 = vector.load %arg5[%c0_10, %c0_11] : memref<1x32xf32, #tpu.memory_space<vmem>>, vector<1x32xf32>
    %16 = vector.broadcast %15 : vector<1x32xf32> to vector<2x32xf32>
    %17 = arith.addf %14, %16 : vector<2x32xf32>
    %cst_12 = arith.constant 0.000000e+00 : f32
    %18 = vector.broadcast %cst_12 : f32 to vector<2x32xf32>
    %19 = arith.cmpf ogt, %17, %18 : vector<2x32xf32>
    %cst_13 = arith.constant 2.000000e-01 : f32
    %20 = vector.broadcast %cst_13 : f32 to vector<2x32xf32>
    %21 = arith.mulf %20, %17 : vector<2x32xf32>
    %22 = arith.select %19, %17, %21 : vector<2x32xi1>, vector<2x32xf32>
    %c0_14 = arith.constant 0 : index
    %c0_15 = arith.constant 0 : index
    %23 = vector.load %arg6[%c0_14, %c0_15] : memref<1x32xbf16, #tpu.memory_space<vmem>>, vector<1x32xbf16>
    %24 = arith.truncf %22 : vector<2x32xf32> to vector<2x32xbf16>
    %cst_16 = arith.constant dense<0.000000e+00> : vector<1x2xf32>
    %25 = tpu.matmul %23, %24, %cst_16 {dimension_numbers = #tpu.dot_dimension_numbers<[1], [1], [0], [0], [0, 0, 1, 0], [], []>} : vector<1x32xbf16>, vector<2x32xbf16>, vector<1x2xf32> -> vector<1x2xf32>
    %c0_17 = arith.constant 0 : index
    %c0_18 = arith.constant 0 : index
    %26 = vector.load %arg7[%c0_17, %c0_18] : memref<1x1xf32, #tpu.memory_space<vmem>>, vector<1x1xf32>
    %27 = vector.broadcast %26 : vector<1x1xf32> to vector<1x2xf32>
    %28 = arith.addf %25, %27 : vector<1x2xf32>
    %c0_19 = arith.constant 0 : index
    %c0_20 = arith.constant 0 : index
    %29 = vector.load %arg8[%c0_19, %c0_20] : memref<1x2xf32, #tpu.memory_space<vmem>>, vector<1x2xf32>
    tpu.vector_store %arg8[%c0_19, %c0_20], %28 {strides = array<i32>} : memref<1x2xf32, #tpu.memory_space<vmem>>, vector<1x2xf32>,
    return
  }
  func.func @transform_0(%arg0: i32) -> (i32, i32) {
    %c0_i32 = arith.constant 0 : i32
    %c0_i32_0 = arith.constant 0 : i32
    return %arg0, %c0_i32 : i32, i32
  }
  func.func @transform_1(%arg0: i32) -> (i32, i32) {
    %c0_i32 = arith.constant 0 : i32
    %c0_i32_0 = arith.constant 0 : i32
    %c0_i32_1 = arith.constant 0 : i32
    return %c0_i32, %c0_i32_0 : i32, i32
  }
  func.func @transform_2(%arg0: i32) -> (i32, i32) {
    %c0_i32 = arith.constant 0 : i32
    %c0_i32_0 = arith.constant 0 : i32
    %c0_i32_1 = arith.constant 0 : i32
    return %c0_i32, %c0_i32_0 : i32, i32
  }
  func.func @transform_3(%arg0: i32) -> (i32, i32) {
    %c0_i32 = arith.constant 0 : i32
    %c0_i32_0 = arith.constant 0 : i32
    %c0_i32_1 = arith.constant 0 : i32
    return %c0_i32, %c0_i32_0 : i32, i32
  }
  func.func @transform_4(%arg0: i32) -> (i32, i32) {
    %c0_i32 = arith.constant 0 : i32
    %c0_i32_0 = arith.constant 0 : i32
    %c0_i32_1 = arith.constant 0 : i32
    return %c0_i32, %c0_i32_0 : i32, i32
  }
  func.func @transform_5(%arg0: i32) -> (i32, i32) {
    %c0_i32 = arith.constant 0 : i32
    %c0_i32_0 = arith.constant 0 : i32
    %c0_i32_1 = arith.constant 0 : i32
    return %c0_i32, %c0_i32_0 : i32, i32
  }
  func.func @transform_6(%arg0: i32) -> (i32, i32) {
    %c0_i32 = arith.constant 0 : i32
    %c0_i32_0 = arith.constant 0 : i32
    %c0_i32_1 = arith.constant 0 : i32
    return %c0_i32, %c0_i32_0 : i32, i32
  }
  func.func @transform_7(%arg0: i32) -> (i32, i32) {
    %c0_i32 = arith.constant 0 : i32
    %c0_i32_0 = arith.constant 0 : i32
    return %c0_i32, %arg0 : i32, i32
  }
}

</mosaic_0001>

<llo_original>
// kernel: tpu_custom_call.1
$region0: #{tpu_custom_call.1}
  #allocation0 [shape = 'u32[]', space=smem, size = 0x4, offset = 0x4, fixed_abs, tag = 'smem constant byte address 0x4 - core index']
  #allocation1 [shape = 'u32[72,128]{1,0:T(1,128)}', space=vmem, size = 0x9000, scoped, tag = 'internal scratch']
  #allocation2 [shape = 'f32[1,1]{1,0:T(1,128)S(1)}', space=vmem, size = 0x200, scoped, tag = 'scoped memory for tpu_custom_call.1']
  %s0 = inlined_call_operand.vmem [shape: f32[2,784], index: 0, kind: input, shape index: {}]
  %s1 = inlined_call_operand.hbm [shape: bf16[784,128], index: 1, kind: input, shape index: {}]
  %s2 = inlined_call_operand.vmem [shape: f32[1,128], index: 2, kind: input, shape index: {}]
  %s3 = inlined_call_operand.vmem [shape: bf16[128,32], index: 3, kind: input, shape index: {}]
  %s4 = inlined_call_operand.vmem [shape: f32[1,32], index: 4, kind: input, shape index: {}]
  %s5 = inlined_call_operand.vmem [shape: bf16[1,32], index: 5, kind: input, shape index: {}]
  %s6 = inlined_call_operand.<no memory space> [shape: f32[1,1], index: 6, kind: input, shape index: {}]
  %s7 = inlined_call_operand.hbm [shape: f32[1,2], index: 7, kind: output, shape index: {}]
  %s8 = sld [smem:[#allocation0]]
  $region42: #{tpu_custom_call.1} parent=0
    _
  %s10 = ssub.s32 1, %s8
  %s11 = scalar_select 0, %s10, %s8
  %v12 = vstv %s6
  %13 = vst [vmem:[#allocation2] sm:$0x1] %v12
  $region1: #{tpu_custom_call.1} parent=0
    #allocation3 [shape = 'u8[200704]{0}', space=vmem, size = 0x31000, scoped, tag = 'input window, operand 1, single buffered']
    #allocation4 [shape = 's32[1]{0}', space=sflag, size = 0x4, scoped, tag = 'scoped memory for tpu_custom_call.1']
    #allocation5 [shape = 's32[1]{0}', space=sflag, size = 0x4, scoped, tag = 'scoped memory for tpu_custom_call.1']
    #allocation6 [shape = 'u8[512]{0}', space=vmem, size = 0x400, scoped, tag = 'output window, operand 0, single buffered']
    %14 = vsyncpa [#allocation4], 0
    %15 = vsyncpa [#allocation5], 0
    // Predicated region
    $region2: #{tpu_custom_call.1} parent=1 // pred_check
      _
    $region3: #{tpu_custom_call.1} parent=1 // pred_check_branch
      %17 = sbr.rel (0) target = $region5
    $region4: #{tpu_custom_call.1} parent=1 // pred_region
      _
    $region5: #{tpu_custom_call.1} parent=1 // pred_fallthru
      _
    // Predicated region
    $region6: #{tpu_custom_call.1} parent=1 // pred_check
      _
    $region7: #{tpu_custom_call.1} parent=1 // pred_check_branch
      %19 = sbr.rel (0) target = $region9
    $region8: #{tpu_custom_call.1} parent=1 // pred_region
      %21 = vsyncadd [#allocation4], 0
      %s22 = sshll.u32 %s1, 4
      %s23 = int_to_ptr.hbm [resolvable:$true] %s22
      %s24 = sshll.u32 [#allocation3], 4
      %s25 = int_to_ptr.vmem [resolvable:$true] %s24
      %30 = dma.hbm_to_vmem [thread:$0]  %s23, 6272, %s25, [#allocation4], 64, 64, 4
    $region9: #{tpu_custom_call.1} parent=1 // pred_fallthru
      _
    // Predicated region
    $region10: #{tpu_custom_call.1} parent=1 // pred_check
      _
    $region11: #{tpu_custom_call.1} parent=1 // pred_check_branch
      %32 = sbr.rel (0) target = $region13
    $region12: #{tpu_custom_call.1} parent=1 // pred_region
      _
    $region13: #{tpu_custom_call.1} parent=1 // pred_fallthru
      _
    // Predicated region
    $region14: #{tpu_custom_call.1} parent=1 // pred_check
      _
    $region15: #{tpu_custom_call.1} parent=1 // pred_check_branch
      %34 = sbr.rel (0) target = $region17
    $region16: #{tpu_custom_call.1} parent=1 // pred_region
      _
    $region17: #{tpu_custom_call.1} parent=1 // pred_fallthru
      _
    // Predicated region
    $region18: #{tpu_custom_call.1} parent=1 // pred_check
      _
    $region19: #{tpu_custom_call.1} parent=1 // pred_check_branch
      %36 = sbr.rel (0) target = $region21
    $region20: #{tpu_custom_call.1} parent=1 // pred_region
      _
    $region21: #{tpu_custom_call.1} parent=1 // pred_fallthru
      _
    // Predicated region
    $region22: #{tpu_custom_call.1} parent=1 // pred_check
      _
    $region23: #{tpu_custom_call.1} parent=1 // pred_check_branch
      %38 = sbr.rel (0) target = $region25
    $region24: #{tpu_custom_call.1} parent=1 // pred_region
      _
    $region25: #{tpu_custom_call.1} parent=1 // pred_fallthru
      _
    // Predicated region
    $region26: #{tpu_custom_call.1} parent=1 // pred_check
      _
    $region27: #{tpu_custom_call.1} parent=1 // pred_check_branch
      %40 = sbr.rel (0) target = $region29
    $region28: #{tpu_custom_call.1} parent=1 // pred_region
      _
    $region29: #{tpu_custom_call.1} parent=1 // pred_fallthru
      _
    // Predicated region
    $region30: #{tpu_custom_call.1} parent=1 // pred_check
      _
    $region31: #{tpu_custom_call.1} parent=1 // pred_check_branch
      %42 = sbr.rel (0) target = $region33
    $region32: #{tpu_custom_call.1} parent=1 // pred_region
      %44 = dma.done [#allocation4], 6272
    $region33: #{tpu_custom_call.1} parent=1 // pred_fallthru
      _
    %v46 = vld [vmem:[%s0] sm:$0xff]
    %v47 = vld [vmem:[%s0 + $0x8] sm:$0x3f]
    %50 = vst [vmem:[#allocation1] ss:$4 sm:$0xff] %v46
    %s51 = scalar_lea.vmem [#allocation1], 32
    %52 = vst [vmem:[%s51] ss:$4 sm:$0xff] %v47
    %v53 = vld.sshfl [vmem:[#allocation1] sm:$0xff pattern:$0x73625140]
    %v54 = vld.sshfl [vmem:[#allocation1 + $0x8] sm:$0xff pattern:$0x73625140]
    %v55 = vld.sshfl [vmem:[#allocation1 + $0x10] sm:$0xff pattern:$0x73625140]
    %v56 = vld.sshfl [vmem:[#allocation1 + $0x18] sm:$0xff pattern:$0x73625140]
    %v57 = vld.sshfl [vmem:[#allocation1 + $0x20] sm:$0xff pattern:$0x73625140]
    %v58 = vld.sshfl [vmem:[#allocation1 + $0x28] sm:$0xff pattern:$0x73625140]
    %v59 = vld.sshfl [vmem:[#allocation1 + $0x30] sm:$0xff pattern:$0x73625140]
    %v67 = vpack.c.bf16 %v53, %v53
    %v68 = vpack.c.bf16 %v54, %v54
    %v69 = vpack.c.bf16 %v55, %v55
    %v70 = vpack.c.bf16 %v56, %v56
    %v71 = vpack.c.bf16 %v57, %v57
    %v72 = vpack.c.bf16 %v58, %v58
    %v73 = vpack.c.bf16 %v59, %v59
    %v74 = vld [vmem:[#allocation3] sm:$0xf]
    %v75 = vld [vmem:[#allocation3 + $0x4] sm:$0xf]
    %v76 = vld [vmem:[#allocation3 + $0x8] sm:$0xf]
    %v77 = vld [vmem:[#allocation3 + $0xc] sm:$0xf]
    %v78 = vld [vmem:[#allocation3 + $0x10] sm:$0xf]
    %v79 = vld [vmem:[#allocation3 + $0x14] sm:$0xf]
    %v80 = vld [vmem:[#allocation3 + $0x18] sm:$0xf]
    %v81 = vld [vmem:[#allocation3 + $0x1c] sm:$0xf]
    %v82 = vld [vmem:[#allocation3 + $0x20] sm:$0xf]
    %v83 = vld [vmem:[#allocation3 + $0x24] sm:$0xf]
    %v84 = vld [vmem:[#allocation3 + $0x28] sm:$0xf]
    %v85 = vld [vmem:[#allocation3 + $0x2c] sm:$0xf]
    %v86 = vld [vmem:[#allocation3 + $0x30] sm:$0xf]
    %v87 = vld [vmem:[#allocation3 + $0x34] sm:$0xf]
    %v88 = vld [vmem:[#allocation3 + $0x38] sm:$0xf]
    %v89 = vld [vmem:[#allocation3 + $0x3c] sm:$0xf]
    %v90 = vld [vmem:[#allocation3 + $0x40] sm:$0xf]
    %v91 = vld [vmem:[#allocation3 + $0x44] sm:$0xf]
    %v92 = vld [vmem:[#allocation3 + $0x48] sm:$0xf]
    %v93 = vld [vmem:[#allocation3 + $0x4c] sm:$0xf]
    %v94 = vld [vmem:[#allocation3 + $0x50] sm:$0xf]
    %v95 = vld [vmem:[#allocation3 + $0x54] sm:$0xf]
    %v96 = vld [vmem:[#allocation3 + $0x58] sm:$0xf]
    %v97 = vld [vmem:[#allocation3 + $0x5c] sm:$0xf]
    %v98 = vld [vmem:[#allocation3 + $0x60] sm:$0xf]
    %v99 = vld [vmem:[#allocation3 + $0x64] sm:$0xf]
    %v100 = vld [vmem:[#allocation3 + $0x68] sm:$0xf]
    %v101 = vld [vmem:[#allocation3 + $0x6c] sm:$0xf]
    %v102 = vld [vmem:[#allocation3 + $0x70] sm:$0xf]
    %v103 = vld [vmem:[#allocation3 + $0x74] sm:$0xf]
    %v104 = vld [vmem:[#allocation3 + $0x78] sm:$0xf]
    %v105 = vld [vmem:[#allocation3 + $0x7c] sm:$0xf]
    %v106 = vld [vmem:[#allocation3 + $0x80] sm:$0xf]
    %v107 = vld [vmem:[#allocation3 + $0x84] sm:$0xf]
    %v108 = vld [vmem:[#allocation3 + $0x88] sm:$0xf]
    %v109 = vld [vmem:[#allocation3 + $0x8c] sm:$0xf]
    %v110 = vld [vmem:[#allocation3 + $0x90] sm:$0xf]
    %v111 = vld [vmem:[#allocation3 + $0x94] sm:$0xf]
    %v112 = vld [vmem:[#allocation3 + $0x98] sm:$0xf]
    %v113 = vld [vmem:[#allocation3 + $0x9c] sm:$0xf]
    %v114 = vld [vmem:[#allocation3 + $0xa0] sm:$0xf]
    %v115 = vld [vmem:[#allocation3 + $0xa4] sm:$0xf]
    %v116 = vld [vmem:[#allocation3 + $0xa8] sm:$0xf]
    %v117 = vld [vmem:[#allocation3 + $0xac] sm:$0xf]
    %v118 = vld [vmem:[#allocation3 + $0xb0] sm:$0xf]
    %v119 = vld [vmem:[#allocation3 + $0xb4] sm:$0xf]
    %v120 = vld [vmem:[#allocation3 + $0xb8] sm:$0xf]
    %v121 = vld [vmem:[#allocation3 + $0xbc] sm:$0xf]
    %v122 = vld [vmem:[#allocation3 + $0xc0] sm:$0xf]
    %v123 = vld [vmem:[#allocation3 + $0xc4] sm:$0xf]
    %v124 = vld [vmem:[#allocation3 + $0xc8] sm:$0xf]
    %v125 = vld [vmem:[#allocation3 + $0xcc] sm:$0xf]
    %v126 = vld [vmem:[#allocation3 + $0xd0] sm:$0xf]
    %v127 = vld [vmem:[#allocation3 + $0xd4] sm:$0xf]
    %v128 = vld [vmem:[#allocation3 + $0xd8] sm:$0xf]
    %v129 = vld [vmem:[#allocation3 + $0xdc] sm:$0xf]
    %v130 = vld [vmem:[#allocation3 + $0xe0] sm:$0xf]
    %v131 = vld [vmem:[#allocation3 + $0xe4] sm:$0xf]
    %v132 = vld [vmem:[#allocation3 + $0xe8] sm:$0xf]
    %v133 = vld [vmem:[#allocation3 + $0xec] sm:$0xf]
    %v134 = vld [vmem:[#allocation3 + $0xf0] sm:$0xf]
    %v135 = vld [vmem:[#allocation3 + $0xf4] sm:$0xf]
    %v136 = vld [vmem:[#allocation3 + $0xf8] sm:$0xf]
    %v137 = vld [vmem:[#allocation3 + $0xfc] sm:$0xf]
    %v138 = vld [vmem:[#allocation3 + $0x100] sm:$0xf]
    %v139 = vld [vmem:[#allocation3 + $0x104] sm:$0xf]
    %v140 = vld [vmem:[#allocation3 + $0x108] sm:$0xf]
    %v141 = vld [vmem:[#allocation3 + $0x10c] sm:$0xf]
    %v142 = vld [vmem:[#allocation3 + $0x110] sm:$0xf]
    %v143 = vld [vmem:[#allocation3 + $0x114] sm:$0xf]
    %v144 = vld [vmem:[#allocation3 + $0x118] sm:$0xf]
    %v145 = vld [vmem:[#allocation3 + $0x11c] sm:$0xf]
    %v146 = vld [vmem:[#allocation3 + $0x120] sm:$0xf]
    %v147 = vld [vmem:[#allocation3 + $0x124] sm:$0xf]
    %v148 = vld [vmem:[#allocation3 + $0x128] sm:$0xf]
    %v149 = vld [vmem:[#allocation3 + $0x12c] sm:$0xf]
    %v150 = vld [vmem:[#allocation3 + $0x130] sm:$0xf]
    %v151 = vld [vmem:[#allocation3 + $0x134] sm:$0xf]
    %v152 = vld [vmem:[#allocation3 + $0x138] sm:$0xf]
    %v153 = vld [vmem:[#allocation3 + $0x13c] sm:$0xf]
    %v154 = vld [vmem:[#allocation3 + $0x140] sm:$0xf]
    %v155 = vld [vmem:[#allocation3 + $0x144] sm:$0xf]
    %v156 = vld [vmem:[#allocation3 + $0x148] sm:$0xf]
    %v157 = vld [vmem:[#allocation3 + $0x14c] sm:$0xf]
    %v158 = vld [vmem:[#allocation3 + $0x150] sm:$0xf]
    %v159 = vld [vmem:[#allocation3 + $0x154] sm:$0xf]
    %v160 = vld [vmem:[#allocation3 + $0x158] sm:$0xf]
    %v161 = vld [vmem:[#allocation3 + $0x15c] sm:$0xf]
    %v162 = vld [vmem:[#allocation3 + $0x160] sm:$0xf]
    %v163 = vld [vmem:[#allocation3 + $0x164] sm:$0xf]
    %v164 = vld [vmem:[#allocation3 + $0x168] sm:$0xf]
    %v165 = vld [vmem:[#allocation3 + $0x16c] sm:$0xf]
    %v166 = vld [vmem:[#allocation3 + $0x170] sm:$0xf]
    %v167 = vld [vmem:[#allocation3 + $0x174] sm:$0xf]
    %v168 = vld [vmem:[#allocation3 + $0x178] sm:$0xf]
    %v169 = vld [vmem:[#allocation3 + $0x17c] sm:$0xf]
    %v170 = vld [vmem:[#allocation3 + $0x180] sm:$0xf]
    %v171 = vld [vmem:[#allocation3 + $0x184] sm:$0xf]
    %v172 = vld [vmem:[%s2] sm:$0x1]
    %v174 = vperm.slane %v172, 0
    %v274 = vunpack.c.l.b16 %v74
    %v275 = vunpack.c.l.b16 %v75
    %v276 = vunpack.c.l.b16 %v76
    %v277 = vunpack.c.l.b16 %v77
    %v278 = vunpack.c.l.b16 %v78
    %v279 = vunpack.c.l.b16 %v79
    %v280 = vunpack.c.l.b16 %v80
    %v281 = vunpack.c.l.b16 %v81
    %v282 = vunpack.c.l.b16 %v82
    %v283 = vunpack.c.l.b16 %v83
    %v284 = vunpack.c.l.b16 %v84
    %v285 = vunpack.c.l.b16 %v85
    %v286 = vunpack.c.l.b16 %v86
    %v287 = vunpack.c.l.b16 %v87
    %v288 = vunpack.c.l.b16 %v88
    %v289 = vunpack.c.l.b16 %v89
    %v290 = vunpack.c.l.b16 %v90
    %v291 = vunpack.c.l.b16 %v91
    %v292 = vunpack.c.l.b16 %v92
    %v293 = vunpack.c.l.b16 %v93
    %v294 = vunpack.c.l.b16 %v94
    %v295 = vunpack.c.l.b16 %v95
    %v296 = vunpack.c.l.b16 %v96
    %v297 = vunpack.c.l.b16 %v97
    %v298 = vunpack.c.l.b16 %v98
    %v299 = vunpack.c.l.b16 %v99
    %v300 = vunpack.c.l.b16 %v100
    %v301 = vunpack.c.l.b16 %v101
    %v302 = vunpack.c.l.b16 %v102
    %v303 = vunpack.c.l.b16 %v103
    %v304 = vunpack.c.l.b16 %v104
    %v305 = vunpack.c.l.b16 %v105
    %v306 = vunpack.c.l.b16 %v106
    %v307 = vunpack.c.l.b16 %v107
    %v308 = vunpack.c.l.b16 %v108
    %v309 = vunpack.c.l.b16 %v109
    %v310 = vunpack.c.l.b16 %v110
    %v311 = vunpack.c.l.b16 %v111
    %v312 = vunpack.c.l.b16 %v112
    %v313 = vunpack.c.l.b16 %v113
    %v314 = vunpack.c.l.b16 %v114
    %v315 = vunpack.c.l.b16 %v115
    %v316 = vunpack.c.l.b16 %v116
    %v317 = vunpack.c.l.b16 %v117
    %v318 = vunpack.c.l.b16 %v118
    %v319 = vunpack.c.l.b16 %v119
    %v320 = vunpack.c.l.b16 %v120
    %v321 = vunpack.c.l.b16 %v121
    %v322 = vunpack.c.l.b16 %v122
    %v323 = vunpack.c.l.b16 %v123
    %v324 = vunpack.c.l.b16 %v124
    %v325 = vunpack.c.l.b16 %v125
    %v326 = vunpack.c.l.b16 %v126
    %v327 = vunpack.c.l.b16 %v127
    %v328 = vunpack.c.l.b16 %v128
    %v329 = vunpack.c.l.b16 %v129
    %v330 = vunpack.c.l.b16 %v130
    %v331 = vunpack.c.l.b16 %v131
    %v332 = vunpack.c.l.b16 %v132
    %v333 = vunpack.c.l.b16 %v133
    %v334 = vunpack.c.l.b16 %v134
    %v335 = vunpack.c.l.b16 %v135
    %v336 = vunpack.c.l.b16 %v136
    %v337 = vunpack.c.l.b16 %v137
    %v338 = vunpack.c.l.b16 %v138
    %v339 = vunpack.c.l.b16 %v139
    %v340 = vunpack.c.l.b16 %v140
    %v341 = vunpack.c.l.b16 %v141
    %v342 = vunpack.c.l.b16 %v142
    %v343 = vunpack.c.l.b16 %v143
    %v344 = vunpack.c.l.b16 %v144
    %v345 = vunpack.c.l.b16 %v145
    %v346 = vunpack.c.l.b16 %v146
    %v347 = vunpack.c.l.b16 %v147
    %v348 = vunpack.c.l.b16 %v148
    %v349 = vunpack.c.l.b16 %v149
    %v350 = vunpack.c.l.b16 %v150
    %v351 = vunpack.c.l.b16 %v151
    %v352 = vunpack.c.l.b16 %v152
    %v353 = vunpack.c.l.b16 %v153
    %v354 = vunpack.c.l.b16 %v154
    %v355 = vunpack.c.l.b16 %v155
    %v356 = vunpack.c.l.b16 %v156
    %v357 = vunpack.c.l.b16 %v157
    %v358 = vunpack.c.l.b16 %v158
    %v359 = vunpack.c.l.b16 %v159
    %v360 = vunpack.c.l.b16 %v160
    %v361 = vunpack.c.l.b16 %v161
    %v362 = vunpack.c.l.b16 %v162
    %v363 = vunpack.c.l.b16 %v163
    %v364 = vunpack.c.l.b16 %v164
    %v365 = vunpack.c.l.b16 %v165
    %v366 = vunpack.c.l.b16 %v166
    %v367 = vunpack.c.l.b16 %v167
    %v368 = vunpack.c.l.b16 %v168
    %v369 = vunpack.c.l.b16 %v169
    %v370 = vunpack.c.l.b16 %v170
    %v371 = vunpack.c.l.b16 %v171
    %v372 = vpack.c.b16 %v275, %v274
    %v373 = vpack.c.b16 %v277, %v276
    %v374 = vpack.c.b16 %v279, %v278
    %v375 = vpack.c.b16 %v281, %v280
    %v376 = vpack.c.b16 %v283, %v282
    %v377 = vpack.c.b16 %v285, %v284
    %v378 = vpack.c.b16 %v287, %v286
    %v379 = vpack.c.b16 %v289, %v288
    %v380 = vpack.c.b16 %v291, %v290
    %v381 = vpack.c.b16 %v293, %v292
    %v382 = vpack.c.b16 %v295, %v294
    %v383 = vpack.c.b16 %v297, %v296
    %v384 = vpack.c.b16 %v299, %v298
    %v385 = vpack.c.b16 %v301, %v300
    %v386 = vpack.c.b16 %v303, %v302
    %v387 = vpack.c.b16 %v305, %v304
    %v388 = vpack.c.b16 %v307, %v306
    %v389 = vpack.c.b16 %v309, %v308
    %v390 = vpack.c.b16 %v311, %v310
    %v391 = vpack.c.b16 %v313, %v312
    %v392 = vpack.c.b16 %v315, %v314
    %v393 = vpack.c.b16 %v317, %v316
    %v394 = vpack.c.b16 %v319, %v318
    %v395 = vpack.c.b16 %v321, %v320
    %v396 = vpack.c.b16 %v323, %v322
    %v397 = vpack.c.b16 %v325, %v324
    %v398 = vpack.c.b16 %v327, %v326
    %v399 = vpack.c.b16 %v329, %v328
    %v400 = vpack.c.b16 %v331, %v330
    %v401 = vpack.c.b16 %v333, %v332
    %v402 = vpack.c.b16 %v335, %v334
    %v403 = vpack.c.b16 %v337, %v336
    %v404 = vpack.c.b16 %v339, %v338
    %v405 = vpack.c.b16 %v341, %v340
    %v406 = vpack.c.b16 %v343, %v342
    %v407 = vpack.c.b16 %v345, %v344
    %v408 = vpack.c.b16 %v347, %v346
    %v409 = vpack.c.b16 %v349, %v348
    %v410 = vpack.c.b16 %v351, %v350
    %v411 = vpack.c.b16 %v353, %v352
    %v412 = vpack.c.b16 %v355, %v354
    %v413 = vpack.c.b16 %v357, %v356
    %v414 = vpack.c.b16 %v359, %v358
    %v415 = vpack.c.b16 %v361, %v360
    %v416 = vpack.c.b16 %v363, %v362
    %v417 = vpack.c.b16 %v365, %v364
    %v418 = vpack.c.b16 %v367, %v366
    %v419 = vpack.c.b16 %v369, %v368
    %v420 = vpack.c.b16 %v371, %v370
    %vm470 = vcmask 130048
    %v472 = vsel %vm470, %v73, 0
    %474 = vmatpush.bf16.msra.mxu0 %v379
    %475 = vmatpush.bf16.msra.mxu0 %v378
    %476 = vmatpush.bf16.msra.mxu0 %v377
    %477 = vmatpush.bf16.msra.mxu0 %v376
    %478 = vmatpush.bf16.msra.mxu0 %v375
    %479 = vmatpush.bf16.msra.mxu0 %v374
    %480 = vmatpush.bf16.msra.mxu0 %v373
    %481 = vmatpush.bf16.msra.mxu0 %v372
    %482 = vmatmul.bf16.gmra.mxu0 %v67
    %v483 = vpop.f32.mrf.mxu0
    %v484 = vadd.f32 %v174, %v483
    %v485 = vpop.f32.mrf.mxu0
    %486 = vdwg.mxu0
    %487 = vmatpush.bf16.msra.mxu0 %v387
    %488 = vmatpush.bf16.msra.mxu0 %v386
    %489 = vmatpush.bf16.msra.mxu0 %v385
    %490 = vmatpush.bf16.msra.mxu0 %v384
    %491 = vmatpush.bf16.msra.mxu0 %v383
    %492 = vmatpush.bf16.msra.mxu0 %v382
    %493 = vmatpush.bf16.msra.mxu0 %v381
    %494 = vmatpush.bf16.msra.mxu0 %v380
    %495 = vmatmul.bf16.gmra.mxu0 %v68
    %v496 = vpop.f32.mrf.mxu0
    %v497 = vadd.f32 %v484, %v496
    %v498 = vpop.f32.mrf.mxu0
    %499 = vdwg.mxu0
    %500 = vmatpush.bf16.msra.mxu0 %v395
    %501 = vmatpush.bf16.msra.mxu0 %v394
    %502 = vmatpush.bf16.msra.mxu0 %v393
    %503 = vmatpush.bf16.msra.mxu0 %v392
    %504 = vmatpush.bf16.msra.mxu0 %v391
    %505 = vmatpush.bf16.msra.mxu0 %v390
    %506 = vmatpush.bf16.msra.mxu0 %v389
    %507 = vmatpush.bf16.msra.mxu0 %v388
    %508 = vmatmul.bf16.gmra.mxu0 %v69
    %v509 = vpop.f32.mrf.mxu0
    %v510 = vadd.f32 %v497, %v509
    %v511 = vpop.f32.mrf.mxu0
    %512 = vdwg.mxu0
    %513 = vmatpush.bf16.msra.mxu0 %v403
    %514 = vmatpush.bf16.msra.mxu0 %v402
    %515 = vmatpush.bf16.msra.mxu0 %v401
    %516 = vmatpush.bf16.msra.mxu0 %v400
    %517 = vmatpush.bf16.msra.mxu0 %v399
    %518 = vmatpush.bf16.msra.mxu0 %v398
    %519 = vmatpush.bf16.msra.mxu0 %v397
    %520 = vmatpush.bf16.msra.mxu0 %v396
    %521 = vmatmul.bf16.gmra.mxu0 %v70
    %v522 = vpop.f32.mrf.mxu0
    %v523 = vadd.f32 %v510, %v522
    %v524 = vpop.f32.mrf.mxu0
    %525 = vdwg.mxu0
    %526 = vmatpush.bf16.msra.mxu0 %v411
    %527 = vmatpush.bf16.msra.mxu0 %v410
    %528 = vmatpush.bf16.msra.mxu0 %v409
    %529 = vmatpush.bf16.msra.mxu0 %v408
    %530 = vmatpush.bf16.msra.mxu0 %v407
    %531 = vmatpush.bf16.msra.mxu0 %v406
    %532 = vmatpush.bf16.msra.mxu0 %v405
    %533 = vmatpush.bf16.msra.mxu0 %v404
    %534 = vmatmul.bf16.gmra.mxu0 %v71
    %v535 = vpop.f32.mrf.mxu0
    %v536 = vadd.f32 %v523, %v535
    %v537 = vpop.f32.mrf.mxu0
    %538 = vdwg.mxu0
    %539 = vmatpush.bf16.msra.mxu0 %v419
    %540 = vmatpush.bf16.msra.mxu0 %v418
    %541 = vmatpush.bf16.msra.mxu0 %v417
    %542 = vmatpush.bf16.msra.mxu0 %v416
    %543 = vmatpush.bf16.msra.mxu0 %v415
    %544 = vmatpush.bf16.msra.mxu0 %v414
    %545 = vmatpush.bf16.msra.mxu0 %v413
    %546 = vmatpush.bf16.msra.mxu0 %v412
    %547 = vmatmul.bf16.gmra.mxu0 %v72
    %v548 = vpop.f32.mrf.mxu0
    %v549 = vadd.f32 %v536, %v548
    %v550 = vpop.f32.mrf.mxu0
    %551 = vdwg.mxu0
    %552 = vmatpush.bf16.msra.mxu0 0
    %553 = vmatpush.bf16.msra.mxu0 0
    %554 = vmatpush.bf16.msra.mxu0 0
    %555 = vmatpush.bf16.msra.mxu0 0
    %556 = vmatpush.bf16.msra.mxu0 0
    %557 = vmatpush.bf16.msra.mxu0 0
    %558 = vmatpush.bf16.msra.mxu0 0
    %559 = vmatpush.bf16.msra.mxu0 %v420
    %560 = vmatmul.bf16.gmra.mxu0 %v472
    %v561 = vpop.f32.mrf.mxu0
    %v562 = vadd.f32 %v549, %v561
    %v563 = vpop.f32.mrf.mxu0
    %564 = vdwg.mxu0
    %vm565 = vcmp.gt.f32.partialorder %v562, 0.0
    %v566 = vmul.f32 %v562, 0.2
    %v567 = vsel %vm565, %v562, %v566
    %v568 = vpack.c.bf16 %v567, %v567
    %v569 = vld [vmem:[%s3] sm:$0xf]
    %v570 = vld [vmem:[%s3 + $0x4] sm:$0xf]
    %v571 = vld [vmem:[%s3 + $0x8] sm:$0xf]
    %v572 = vld [vmem:[%s3 + $0xc] sm:$0xf]
    %v573 = vld [vmem:[%s3 + $0x10] sm:$0xf]
    %v574 = vld [vmem:[%s3 + $0x14] sm:$0xf]
    %v575 = vld [vmem:[%s3 + $0x18] sm:$0xf]
    %v576 = vld [vmem:[%s3 + $0x1c] sm:$0xf]
    %v577 = vld [vmem:[%s3 + $0x20] sm:$0xf]
    %v578 = vld [vmem:[%s3 + $0x24] sm:$0xf]
    %v579 = vld [vmem:[%s3 + $0x28] sm:$0xf]
    %v580 = vld [vmem:[%s3 + $0x2c] sm:$0xf]
    %v581 = vld [vmem:[%s3 + $0x30] sm:$0xf]
    %v582 = vld [vmem:[%s3 + $0x34] sm:$0xf]
    %v583 = vld [vmem:[%s3 + $0x38] sm:$0xf]
    %v584 = vld [vmem:[%s3 + $0x3c] sm:$0xf]
    %v585 = vld [vmem:[%s4] sm:$0x1]
    %v587 = vperm.slane %v585, 0
    %v605 = vunpack.c.l.b16 %v569
    %v606 = vunpack.c.l.b16 %v570
    %v607 = vunpack.c.l.b16 %v571
    %v608 = vunpack.c.l.b16 %v572
    %v609 = vunpack.c.l.b16 %v573
    %v610 = vunpack.c.l.b16 %v574
    %v611 = vunpack.c.l.b16 %v575
    %v612 = vunpack.c.l.b16 %v576
    %v613 = vunpack.c.l.b16 %v577
    %v614 = vunpack.c.l.b16 %v578
    %v615 = vunpack.c.l.b16 %v579
    %v616 = vunpack.c.l.b16 %v580
    %v617 = vunpack.c.l.b16 %v581
    %v618 = vunpack.c.l.b16 %v582
    %v619 = vunpack.c.l.b16 %v583
    %v620 = vunpack.c.l.b16 %v584
    %v621 = vpack.c.b16 %v606, %v605
    %v622 = vpack.c.b16 %v608, %v607
    %v623 = vpack.c.b16 %v610, %v609
    %v624 = vpack.c.b16 %v612, %v611
    %v625 = vpack.c.b16 %v614, %v613
    %v626 = vpack.c.b16 %v616, %v615
    %v627 = vpack.c.b16 %v618, %v617
    %v628 = vpack.c.b16 %v620, %v619
    %637 = vmatpush.bf16.msra.mxu0 %v628
    %638 = vmatpush.bf16.msra.mxu0 %v627
    %639 = vmatpush.bf16.msra.mxu0 %v626
    %640 = vmatpush.bf16.msra.mxu0 %v625
    %641 = vmatpush.bf16.msra.mxu0 %v624
    %642 = vmatpush.bf16.msra.mxu0 %v623
    %643 = vmatpush.bf16.msra.mxu0 %v622
    %644 = vmatpush.bf16.msra.mxu0 %v621
    %645 = vmatmul.bf16.gmra.mxu0 %v568
    %v646 = vpop.f32.mrf.mxu0
    %v647 = vadd.f32 %v587, %v646
    %v648 = vpop.f32.mrf.mxu0
    %649 = vdwg.mxu0
    %vm650 = vcmp.gt.f32.partialorder %v647, 0.0
    %v651 = vmul.f32 %v647, 0.2
    %v652 = vsel %vm650, %v647, %v651
    %v653 = vld [vmem:[%s5] sm:$0x1]
    %v654 = vpack.c.bf16 %v652, %v652
    %v655 = vld [vmem:[#allocation2] sm:$0x1]
    %657 = vset.pattern.permute.xlu0 0
    %658 = vperm.xlu0 %657, %v655
    %v659 = vpop.permute.xlu0 %658
    %v661 = vperm.slane %v659, 0
    %vm662 = vcmask 261120
    %v664 = vsel %vm662, %v653, 0
    %v667 = vsel %vm662, %v654, 0
    %669 = vmatpush.bf16.xpose.msra.mxu0 0
    %670 = vmatpush.bf16.xpose.msra.mxu0 0
    %671 = vmatpush.bf16.xpose.msra.mxu0 0
    %672 = vmatpush.bf16.xpose.msra.mxu0 0
    %673 = vmatpush.bf16.xpose.msra.mxu0 0
    %674 = vmatpush.bf16.xpose.msra.mxu0 0
    %675 = vmatpush.bf16.xpose.msra.mxu0 0
    %676 = vmatpush.bf16.xpose.msra.mxu0 %v667
    %677 = vmatmul.bf16.gmra.mxu0 %v664
    %v678 = vpop.f32.mrf.mxu0
    %v679 = vadd.f32 %v661, %v678
    %v680 = vpop.f32.mrf.mxu0
    %681 = vdwg.mxu0
    %vm682 = vcmask 8192
    %683 = vst.msk [vmem:[#allocation6] sm:$0x1] %vm682, %v679
    // Predicated region
    $region34: #{tpu_custom_call.1} parent=1 // pred_check
      _
    $region35: #{tpu_custom_call.1} parent=1 // pred_check_branch
      %685 = sbr.rel (0) target = $region37
    $region36: #{tpu_custom_call.1} parent=1 // pred_region
      %687 = vsyncadd [#allocation5], 0
      %s689 = sshll.u32 [#allocation6], 4
      %s690 = int_to_ptr.vmem [resolvable:$true] %s689
      %s691 = sshll.u32 %s7, 4
      %s692 = int_to_ptr.hbm [resolvable:$true] %s691
      %694 = dma.vmem_to_hbm [thread:$0]  %s690, 16, %s692, [#allocation5]
    $region37: #{tpu_custom_call.1} parent=1 // pred_fallthru
      _
    // Predicated region
    $region38: #{tpu_custom_call.1} parent=1 // pred_check
      _
    $region39: #{tpu_custom_call.1} parent=1 // pred_check_branch
      %696 = sbr.rel (0) target = $region41
    $region40: #{tpu_custom_call.1} parent=1 // pred_region
      %698 = dma.done [#allocation5], 16
    $region41: #{tpu_custom_call.1} parent=1 // pred_fallthru
      _
    %699 = vsyncpa [#allocation4], 1
    %700 = vsyncpa [#allocation5], 1

</llo_original>
